<compile_context>
chip_gen: v6e
topology: v6e:2x2x1
jax: 0.10.0
libtpu: 0.0.40
codegen_flags: <defaults>
</compile_context>

<pallas_src>
import functools

import jax
import jax.numpy as jnp
from jax import lax
from jax.experimental import pallas as pl
from jax.experimental.pallas import tpu as pltpu

_LANE = 128


def _cdiv(a, b):
    return -(-a // b)


def _round_up(x, m):
    return _cdiv(x, m) * m


def _pow_int(x, n: int):
    """x ** n for a static positive integer n via a multiply chain (VPU only)."""
    acc = None
    base = x
    while n > 0:
        if n & 1:
            acc = base if acc is None else acc * base
        n >>= 1
        if n:
            base = base * base
    return acc


def _gem_kernel(seg_ref, x_ref, o_ref, *, p, eps, inv_l):
    # Hot path: clamp -> pow(p) multiply chain (VPU) -> segmented lane
    # reduction on the MXU -> 1/p root (EUP, only G*tile elements).
    x = x_ref[...].astype(jnp.float32)
    x = jnp.maximum(x, eps)
    p_int = int(p)
    if float(p_int) == p and 1 <= p_int <= 64:
        xp = _pow_int(x, p_int)              # VPU multiplies, no EUP per element
    else:
        xp = x ** p                          # fallback for non-integral p
    # (G, Lp) x (tile_r, Lp) contracted on the lane axis -> (G, tile_r):
    # lane-dense result, no cross-lane XLU reduction, no relayout.
    s = lax.dot_general(seg_ref[...], xp,
                        dimension_numbers=(((1,), (1,)), ((), ())),
                        preferred_element_type=jnp.float32)
    y = (s * inv_l) ** (1.0 / p)             # only G * tile_r transcendentals
    o_ref[...] = y.astype(o_ref.dtype)


def generalized_mean_pooling(x, norm=3, output_size=1, eps=1e-6):
    """GeM pooling. x: [B, C, L] -> [B, C, 1] (output_size must be 1)."""
    assert norm > 0
    if output_size != 1:
        # TODO(synk): general adaptive_avg_pool1d output_size > 1 not implemented.
        raise NotImplementedError("only output_size=1 supported")
    p = float(norm)

    B, C, L = x.shape
    rows = B * C
    itemsize = jnp.dtype(x.dtype).itemsize

    # Small-L packing: put G rows into one lane-row so lanes stay dense in
    # VMEM.  Free (row-major contiguous) reshape; G must divide rows.
    G = 1
    if L < _LANE:
        g_max = min(max(1, _LANE // L), rows)
        for g in range(g_max, 0, -1):
            if rows % g == 0:
                G = g
                break
    rows_p = rows // G
    lp = G * L
    x_p = x.reshape(rows_p, lp)

    # Row-tile size (sublane axis of the input, lane axis of the output).
    l_pad = _round_up(lp, _LANE)             # VMEM lane padding of one row
    target_buf_bytes = 8 * 1024 * 1024       # ~8 MiB input block (dtype-aware)
    if rows_p <= _LANE:
        tile_r = rows_p                      # single full block, no OOB at all
    else:
        tile_r = max(_LANE,
                     (target_buf_bytes // (l_pad * itemsize)) // _LANE * _LANE)
        tile_r = min(tile_r, _round_up(rows_p, _LANE))
        # Keep >= 2 grid steps so the "parallel" axis spans both v7x TCs.
        tile_r = min(tile_r, max(_LANE, _round_up(_cdiv(rows_p, 2), _LANE)))
    n_tiles = _cdiv(rows_p, tile_r)          # last block may be partial (no pad)

    # Segment-sum matrix: seg[g, j] = 1.0 iff lane j belongs to segment g.
    seg = (jnp.arange(lp, dtype=jnp.int32)[None, :] // L
           == jnp.arange(G, dtype=jnp.int32)[:, None]).astype(jnp.float32)

    p_is_int = float(int(p)) == p
    cost = pl.CostEstimate(
        flops=((int(p) + 2) * rows * L if p_is_int else 4 * rows * L)
              + 2 * rows * L,                               # MXU segment reduce
        transcendentals=2 * rows if p_is_int else 2 * rows * L + 2 * rows,
        bytes_accessed=rows * L * itemsize + rows * itemsize,
    )

    out = pl.pallas_call(
        functools.partial(_gem_kernel, p=p, eps=float(eps), inv_l=1.0 / L),
        out_shape=jax.ShapeDtypeStruct((G, rows_p), x.dtype),
        grid_spec=pltpu.PrefetchScalarGridSpec(
            num_scalar_prefetch=0,
            grid=(n_tiles,),
            in_specs=[
                pl.BlockSpec((G, lp), lambda i: (0, 0)),        # seg: resident
                pl.BlockSpec((tile_r, lp), lambda i: (i, 0)),   # row tile
            ],
            out_specs=pl.BlockSpec((G, tile_r), lambda i: (0, i)),
        ),
        compiler_params=pltpu.CompilerParams(
            dimension_semantics=("parallel",),
            vmem_limit_bytes=40 * 1024 * 1024),
        cost_estimate=cost,
    )(seg, x_p)

    # out[g, r] is the pooled value of original row r * G + g.
    return out.T.reshape(B, C, 1)


def _reference(x, norm=3, eps=1e-6):
    p = float(norm)
    xc = jnp.maximum(x.astype(jnp.float32), eps) ** p
    m = jnp.mean(xc, axis=-1, keepdims=True)
    return (m ** (1.0 / p)).astype(x.dtype)


if __name__ == "__main__":
    key = jax.random.PRNGKey(0)
    keys = jax.random.split(key, 4)

    # GeneralizedMeanPooling has no learned parameters (p=3 fixed scalar).
    cases = [
        (2, 4, 16),    # small L -> packed path (G=8)
        (2, 6, 196),   # L not a multiple of 128, single full block
        (3, 5, 160),   # rows not a multiple of 8/128 (full-dim block)
        (2, 80, 130),  # rows_p > 128 -> 2 grid steps, partial last block
    ]
    for k, (B, C, L) in zip(keys, cases):
        x = jax.random.normal(k, (B, C, L), dtype=jnp.float32)
        y = jax.block_until_ready(
            generalized_mean_pooling(x, norm=3, output_size=1, eps=1e-6))
        y_ref = _reference(x, norm=3, eps=1e-6)
        assert y.shape == (B, C, 1), (y.shape, (B, C, 1))
        assert jnp.allclose(y, y_ref, atol=1e-5, rtol=1e-5), (B, C, L)

    print("KERNEL_OK")
</pallas_src>

<mosaic_0001>
module attributes {stable_mosaic.version = 11 : i64} {
  func.func @_gem_kernel(%arg0: i32, %arg1: memref<8x128xf32, #tpu.memory_space<vmem>>, %arg2: memref<1x128xf32, #tpu.memory_space<vmem>>, %arg3: memref<8x1xf32, #tpu.memory_space<vmem>>) attributes {dimension_semantics = [#tpu.dimension_semantics<parallel>], iteration_bounds = array<i64: 1>, scalar_prefetch = 0 : i64, scratch_operands = 0 : i64, tpu.core_type = #tpu.core_type<tc>, window_params = [{pipeline_mode = #tpu.pipeline_mode<synchronous>, transform_indices = @transform_0, window_bounds = array<i64: 8, 128>}, {transform_indices = @transform_1, window_bounds = array<i64: 1, 128>}, {transform_indices = @transform_2, window_bounds = array<i64: 8, 1>}]} {
    %c0 = arith.constant 0 : index
    %c0_0 = arith.constant 0 : index
    %0 = vector.load %arg2[%c0, %c0_0] : memref<1x128xf32, #tpu.memory_space<vmem>>, vector<1x128xf32>
    %cst = arith.constant 9.99999997E-7 : f32
    %1 = vector.broadcast %cst : f32 to vector<1x128xf32>
    %2 = arith.maximumf %0, %1 : vector<1x128xf32>
    %3 = arith.mulf %2, %2 : vector<1x128xf32>
    %4 = arith.mulf %2, %3 : vector<1x128xf32>
    %c0_1 = arith.constant 0 : index
    %c0_2 = arith.constant 0 : index
    %5 = vector.load %arg1[%c0_1, %c0_2] : memref<8x128xf32, #tpu.memory_space<vmem>>, vector<8x128xf32>
    %cst_3 = arith.constant dense<0.000000e+00> : vector<8x1xf32>
    %6 = tpu.matmul %5, %4, %cst_3 {dimension_numbers = #tpu.dot_dimension_numbers<[1], [1], [0], [0], [0, 0, 1, 0], [], []>} : vector<8x128xf32>, vector<1x128xf32>, vector<8x1xf32> -> vector<8x1xf32>
    %cst_4 = arith.constant 6.250000e-02 : f32
    %7 = vector.broadcast %cst_4 : f32 to vector<8x1xf32>
    %8 = arith.mulf %6, %7 : vector<8x1xf32>
    %cst_5 = arith.constant 0.333333343 : f32
    %9 = vector.broadcast %cst_5 : f32 to vector<8x1xf32>
    %10 = math.powf %8, %9 : vector<8x1xf32>
    %c0_6 = arith.constant 0 : index
    %c0_7 = arith.constant 0 : index
    %11 = vector.load %arg3[%c0_6, %c0_7] : memref<8x1xf32, #tpu.memory_space<vmem>>, vector<8x1xf32>
    tpu.vector_store %arg3[%c0_6, %c0_7], %10 {strides = array<i32>} : memref<8x1xf32, #tpu.memory_space<vmem>>, vector<8x1xf32>,
    return
  }
  func.func @transform_0(%arg0: i32) -> (i32, i32) {
    %c0_i32 = arith.constant 0 : i32
    %c0_i32_0 = arith.constant 0 : i32
    %c0_i32_1 = arith.constant 0 : i32
    return %c0_i32, %c0_i32_0 : i32, i32
  }
  func.func @transform_1(%arg0: i32) -> (i32, i32) {
    %c0_i32 = arith.constant 0 : i32
    %c0_i32_0 = arith.constant 0 : i32
    return %arg0, %c0_i32 : i32, i32
  }
  func.func @transform_2(%arg0: i32) -> (i32, i32) {
    %c0_i32 = arith.constant 0 : i32
    %c0_i32_0 = arith.constant 0 : i32
    return %c0_i32, %arg0 : i32, i32
  }
}

</mosaic_0001>

<llo_original>
// kernel: tpu_custom_call.1
$region0: #{tpu_custom_call.1}
  #allocation0 [shape = 'u32[]', space=smem, size = 0x4, offset = 0x4, fixed_abs, tag = 'smem constant byte address 0x4 - core index']
  #allocation1 [shape = 'u32[144,128]{1,0:T(1,128)}', space=vmem, size = 0x12000, scoped, tag = 'internal scratch']
  %s0 = inlined_call_operand.hbm [shape: f32[8,128], index: 0, kind: input, shape index: {}]
  %s1 = inlined_call_operand.vmem [shape: f32[1,128], index: 1, kind: input, shape index: {}]
  %s2 = inlined_call_operand.vmem [shape: f32[8,1], index: 2, kind: output, shape index: {}]
  %s3 = sld [smem:[#allocation0]]
  $region22: #{tpu_custom_call.1} parent=0
    _
  %s5 = ssub.s32 1, %s3
  %s6 = scalar_select 0, %s5, %s3
  $region1: #{tpu_custom_call.1} parent=0
    #allocation2 [shape = 'u8[4096]{0}', space=vmem, size = 0x1000, scoped, tag = 'input window, operand 0, single buffered']
    #allocation3 [shape = 's32[1]{0}', space=sflag, size = 0x4, scoped, tag = 'scoped memory for tpu_custom_call.1']
    %7 = vsyncpa [#allocation3], 0
    // Predicated region
    $region2: #{tpu_custom_call.1} parent=1 // pred_check
      _
    $region3: #{tpu_custom_call.1} parent=1 // pred_check_branch
      %9 = sbr.rel (0) target = $region5
    $region4: #{tpu_custom_call.1} parent=1 // pred_region
      %s11 = ssub.s32 128, 128
      %12 = vsyncadd [#allocation3], %s11
      %s14 = sshll.u32 [#allocation2], 4
      %s15 = int_to_ptr.vmem [resolvable:$true] %s14
      %17 = dma.hbm_to_vmem [thread:$0]  %s0, 128, %s15, [#allocation3]
    $region5: #{tpu_custom_call.1} parent=1 // pred_fallthru
      _
    // Predicated region
    $region6: #{tpu_custom_call.1} parent=1 // pred_check
      _
    $region7: #{tpu_custom_call.1} parent=1 // pred_check_branch
      %19 = sbr.rel (0) target = $region9
    $region8: #{tpu_custom_call.1} parent=1 // pred_region
      _
    $region9: #{tpu_custom_call.1} parent=1 // pred_fallthru
      _
    // Predicated region
    $region10: #{tpu_custom_call.1} parent=1 // pred_check
      _
    $region11: #{tpu_custom_call.1} parent=1 // pred_check_branch
      %21 = sbr.rel (0) target = $region13
    $region12: #{tpu_custom_call.1} parent=1 // pred_region
      %22 = dma.done [#allocation3], 128
    $region13: #{tpu_custom_call.1} parent=1 // pred_fallthru
      _
    %v23 = vld [vmem:[%s1] sm:$0x1]
    %v24 = vmax.f32 %v23, 1e-06
    %v25 = vmul.f32 %v24, %v24
    %v26 = vmul.f32 %v24, %v25
    %v27 = vld [vmem:[#allocation2] sm:$0xff]
    %v29 = vlaneseq
    %v30 = vshrl.u32 %v29, 7
    %v31 = vsub.s32 0, %v30
    %v32 = vrot.slane %v26, %v31
    %v34 = vmul.f32 %v27, %v32
    %35 = vadd.xlane.f32.xlu0 %v34
    %v36 = vpop.xlane.xlu0 %35
    %v37 = vmul.f32 %v36, 0.0625
    %v38 = vpow.f32 %v37, 0.33333334
    %vm39 = vcmask 7168
    %40 = vst.msk [vmem:[%s2] sm:$0xff] %vm39, %v38
    // Predicated region
    $region14: #{tpu_custom_call.1} parent=1 // pred_check
      _
    $region15: #{tpu_custom_call.1} parent=1 // pred_check_branch
      %42 = sbr.rel (0) target = $region17
    $region16: #{tpu_custom_call.1} parent=1 // pred_region
      _
    $region17: #{tpu_custom_call.1} parent=1 // pred_fallthru
      _
    // Predicated region
    $region18: #{tpu_custom_call.1} parent=1 // pred_check
      _
    $region19: #{tpu_custom_call.1} parent=1 // pred_check_branch
      %44 = sbr.rel (0) target = $region21
    $region20: #{tpu_custom_call.1} parent=1 // pred_region
      _
    $region21: #{tpu_custom_call.1} parent=1 // pred_fallthru
      _
    %45 = vsyncpa [#allocation3], 1

</llo_original>
